<compile_context>
chip_gen: v6e
topology: v6e:2x2x1
jax: 0.10.0
libtpu: 0.0.40
codegen_flags: <defaults>
</compile_context>

<pallas_src>
import functools

import jax
import jax.numpy as jnp
from jax.experimental import pallas as pl
from jax.experimental.pallas import tpu as pltpu

DROPOUT_P = 0.2
_KEEP_SCALE = 1.0 / (1.0 - DROPOUT_P)
_DROP_THRESHOLD = int(DROPOUT_P * (1 << 32))  # bits < threshold  ->  dropped


def _round_up(x, m):
    return ((x + m - 1) // m) * m


def _mlp_kernel(x_ref, bits_ref, w1_ref, b1_ref, w2_ref, b2_ref, o_ref,
                *, drop_threshold, keep_scale):
    # ---- dropout: keep w.p. (1-p), scale kept values by 1/(1-p) ----
    x = x_ref[...]
    keep = bits_ref[...] >= jnp.uint32(drop_threshold)
    x_d = x * jnp.where(keep, jnp.float32(keep_scale), jnp.float32(0.0))

    # ---- linear1 + sigmoid (f32 accumulate on MXU; sigmoid uses the EUP) ----
    h = jnp.dot(x_d, w1_ref[...], preferred_element_type=jnp.float32) + b1_ref[...]
    h = jax.nn.sigmoid(h)

    # ---- linear2 ----
    out = jnp.dot(h, w2_ref[...], preferred_element_type=jnp.float32) + b2_ref[...]
    o_ref[...] = out.astype(o_ref.dtype)


def my_module_forward(x, w1, b1, w2, b2, key, *, training=True, tile_b=256):
    """x: [B, num_inputs]; w1: [num_inputs, H]; b1: [H] or [1, H];
       w2: [H, num_outputs]; b2: [num_outputs] or [1, num_outputs]."""
    B, n_in = x.shape
    n_hidden = w1.shape[1]
    n_out = w2.shape[1]

    # Lane-dense padded sizes and batch tiling.
    in_p = _round_up(n_in, 128)
    h_p = _round_up(n_hidden, 128)
    out_p = _round_up(n_out, 128)
    tile_b = min(tile_b, _round_up(B, 8))
    b_p = _round_up(B, tile_b)

    f32 = jnp.float32
    x_p = jnp.pad(x.astype(f32), ((0, b_p - B), (0, in_p - n_in)))
    w1_p = jnp.pad(w1.astype(f32), ((0, in_p - n_in), (0, h_p - n_hidden)))
    b1_p = jnp.pad(b1.astype(f32).reshape(1, -1), ((0, 0), (0, h_p - n_hidden)))
    w2_p = jnp.pad(w2.astype(f32), ((0, h_p - n_hidden), (0, out_p - n_out)))
    b2_p = jnp.pad(b2.astype(f32).reshape(1, -1), ((0, 0), (0, out_p - n_out)))

    if training:
        bits = jax.random.bits(key, (b_p, in_p), dtype=jnp.uint32)
        drop_threshold, keep_scale = _DROP_THRESHOLD, _KEEP_SCALE
    else:
        # nn.Dropout is identity at eval time.
        bits = jnp.zeros((b_p, in_p), dtype=jnp.uint32)
        drop_threshold, keep_scale = 0, 1.0

    kernel = functools.partial(
        _mlp_kernel, drop_threshold=drop_threshold, keep_scale=keep_scale)

    flops = 2 * b_p * (in_p * h_p + h_p * out_p)
    bytes_accessed = 4 * (x_p.size + bits.size + w1_p.size + b1_p.size
                          + w2_p.size + b2_p.size + b_p * out_p)

    out_full = pl.pallas_call(
        kernel,
        out_shape=jax.ShapeDtypeStruct((b_p, out_p), jnp.float32),
        grid=(b_p // tile_b,),
        in_specs=[
            pl.BlockSpec((tile_b, in_p), lambda i: (i, 0)),  # x tile
            pl.BlockSpec((tile_b, in_p), lambda i: (i, 0)),  # dropout bits tile
            pl.BlockSpec((in_p, h_p), lambda i: (0, 0)),     # w1 (resident)
            pl.BlockSpec((1, h_p), lambda i: (0, 0)),        # b1 (resident)
            pl.BlockSpec((h_p, out_p), lambda i: (0, 0)),    # w2 (resident)
            pl.BlockSpec((1, out_p), lambda i: (0, 0)),      # b2 (resident)
        ],
        out_specs=pl.BlockSpec((tile_b, out_p), lambda i: (i, 0)),
        compiler_params=pltpu.CompilerParams(
            dimension_semantics=("parallel",)),
        cost_estimate=pl.CostEstimate(
            flops=flops,
            transcendentals=b_p * h_p,
            bytes_accessed=bytes_accessed),
    )(x_p, bits, w1_p, b1_p, w2_p, b2_p)

    return out_full[:B, :n_out]


def init_params(key, num_inputs, num_outputs, hidden_size):
    """Deterministic init mirroring nn.Linear: U(-1/sqrt(fan_in), 1/sqrt(fan_in))."""
    k1, k2, k3, k4 = jax.random.split(key, 4)
    bound1 = 1.0 / jnp.sqrt(num_inputs)
    bound2 = 1.0 / jnp.sqrt(hidden_size)
    w1 = jax.random.uniform(k1, (num_inputs, hidden_size), jnp.float32, -bound1, bound1)
    b1 = jax.random.uniform(k2, (1, hidden_size), jnp.float32, -bound1, bound1)
    w2 = jax.random.uniform(k3, (hidden_size, num_outputs), jnp.float32, -bound2, bound2)
    b2 = jax.random.uniform(k4, (1, num_outputs), jnp.float32, -bound2, bound2)
    return w1, b1, w2, b2


if __name__ == "__main__":
    num_inputs, hidden_size, num_outputs = 16, 32, 8
    batch = 8

    key = jax.random.PRNGKey(0)
    kx, kp, kd = jax.random.split(key, 3)
    x = jax.random.normal(kx, (batch, num_inputs), jnp.float32)
    w1, b1, w2, b2 = init_params(kp, num_inputs, num_outputs, hidden_size)

    out = my_module_forward(x, w1, b1, w2, b2, kd, training=True)
    jax.block_until_ready(out)
    assert out.shape == (batch, num_outputs)
    assert bool(jnp.all(jnp.isfinite(out)))
    print("KERNEL_OK")
</pallas_src>

<mosaic_0001>
module attributes {stable_mosaic.version = 11 : i64} {
  func.func @_mlp_kernel(%arg0: i32, %arg1: memref<8x128xf32, #tpu.memory_space<vmem>>, %arg2: memref<8x128xi32, #tpu.memory_space<vmem>>, %arg3: memref<128x128xf32, #tpu.memory_space<vmem>>, %arg4: memref<1x128xf32, #tpu.memory_space<vmem>>, %arg5: memref<128x128xf32, #tpu.memory_space<vmem>>, %arg6: memref<1x128xf32, #tpu.memory_space<vmem>>, %arg7: memref<8x128xf32, #tpu.memory_space<vmem>>) attributes {dimension_semantics = [#tpu.dimension_semantics<parallel>], iteration_bounds = array<i64: 1>, scalar_prefetch = 0 : i64, scratch_operands = 0 : i64, tpu.core_type = #tpu.core_type<tc>, window_params = [{transform_indices = @transform_0, window_bounds = array<i64: 8, 128>}, {transform_indices = @transform_1, window_bounds = array<i64: 8, 128>}, {pipeline_mode = #tpu.pipeline_mode<synchronous>, transform_indices = @transform_2, window_bounds = array<i64: 128, 128>}, {pipeline_mode = #tpu.pipeline_mode<synchronous>, transform_indices = @transform_3, window_bounds = array<i64: 1, 128>}, {pipeline_mode = #tpu.pipeline_mode<synchronous>, transform_indices = @transform_4, window_bounds = array<i64: 128, 128>}, {pipeline_mode = #tpu.pipeline_mode<synchronous>, transform_indices = @transform_5, window_bounds = array<i64: 1, 128>}, {transform_indices = @transform_6, window_bounds = array<i64: 8, 128>}]} {
    %c0 = arith.constant 0 : index
    %c0_0 = arith.constant 0 : index
    %0 = vector.load %arg1[%c0, %c0_0] : memref<8x128xf32, #tpu.memory_space<vmem>>, vector<8x128xf32>
    %c0_1 = arith.constant 0 : index
    %c0_2 = arith.constant 0 : index
    %1 = vector.load %arg2[%c0_1, %c0_2] : memref<8x128xi32, #tpu.memory_space<vmem>>, vector<8x128xi32>
    %c858993459_i32 = arith.constant 858993459 : i32
    %2 = vector.broadcast %c858993459_i32 : i32 to vector<8x128xi32>
    %3 = arith.cmpi uge, %1, %2 : vector<8x128xi32>
    %cst = arith.constant 1.250000e+00 : f32
    %cst_3 = arith.constant 0.000000e+00 : f32
    %4 = vector.broadcast %cst : f32 to vector<8x128xf32>
    %5 = vector.broadcast %cst_3 : f32 to vector<8x128xf32>
    %6 = arith.select %3, %4, %5 : vector<8x128xi1>, vector<8x128xf32>
    %7 = arith.mulf %0, %6 : vector<8x128xf32>
    %c0_4 = arith.constant 0 : index
    %c0_5 = arith.constant 0 : index
    %8 = vector.load %arg3[%c0_4, %c0_5] : memref<128x128xf32, #tpu.memory_space<vmem>>, vector<128x128xf32>
    %cst_6 = arith.constant dense<0.000000e+00> : vector<8x128xf32>
    %9 = tpu.matmul %7, %8, %cst_6 {dimension_numbers = #tpu.dot_dimension_numbers<[1], [0], [0], [1], [0, 0, 1, 1], [], []>} : vector<8x128xf32>, vector<128x128xf32>, vector<8x128xf32> -> vector<8x128xf32>
    %c0_7 = arith.constant 0 : index
    %c0_8 = arith.constant 0 : index
    %10 = vector.load %arg4[%c0_7, %c0_8] : memref<1x128xf32, #tpu.memory_space<vmem>>, vector<1x128xf32>
    %11 = vector.broadcast %10 : vector<1x128xf32> to vector<8x128xf32>
    %12 = arith.addf %9, %11 : vector<8x128xf32>
    %13 = arith.negf %12 : vector<8x128xf32>
    %14 = math.exp %13 : vector<8x128xf32>
    %cst_9 = arith.constant 1.000000e+00 : f32
    %15 = vector.broadcast %cst_9 : f32 to vector<8x128xf32>
    %16 = arith.addf %15, %14 : vector<8x128xf32>
    %17 = arith.divf %15, %16 : vector<8x128xf32>
    %c0_10 = arith.constant 0 : index
    %c0_11 = arith.constant 0 : index
    %18 = vector.load %arg5[%c0_10, %c0_11] : memref<128x128xf32, #tpu.memory_space<vmem>>, vector<128x128xf32>
    %cst_12 = arith.constant dense<0.000000e+00> : vector<8x128xf32>
    %19 = tpu.matmul %17, %18, %cst_12 {dimension_numbers = #tpu.dot_dimension_numbers<[1], [0], [0], [1], [0, 0, 1, 1], [], []>} : vector<8x128xf32>, vector<128x128xf32>, vector<8x128xf32> -> vector<8x128xf32>
    %c0_13 = arith.constant 0 : index
    %c0_14 = arith.constant 0 : index
    %20 = vector.load %arg6[%c0_13, %c0_14] : memref<1x128xf32, #tpu.memory_space<vmem>>, vector<1x128xf32>
    %21 = vector.broadcast %20 : vector<1x128xf32> to vector<8x128xf32>
    %22 = arith.addf %19, %21 : vector<8x128xf32>
    %c0_15 = arith.constant 0 : index
    %c0_16 = arith.constant 0 : index
    %23 = vector.load %arg7[%c0_15, %c0_16] : memref<8x128xf32, #tpu.memory_space<vmem>>, vector<8x128xf32>
    tpu.vector_store %arg7[%c0_15, %c0_16], %22 {strides = array<i32>} : memref<8x128xf32, #tpu.memory_space<vmem>>, vector<8x128xf32>,
    return
  }
  func.func @transform_0(%arg0: i32) -> (i32, i32) {
    %c0_i32 = arith.constant 0 : i32
    %c0_i32_0 = arith.constant 0 : i32
    return %arg0, %c0_i32 : i32, i32
  }
  func.func @transform_1(%arg0: i32) -> (i32, i32) {
    %c0_i32 = arith.constant 0 : i32
    %c0_i32_0 = arith.constant 0 : i32
    return %arg0, %c0_i32 : i32, i32
  }
  func.func @transform_2(%arg0: i32) -> (i32, i32) {
    %c0_i32 = arith.constant 0 : i32
    %c0_i32_0 = arith.constant 0 : i32
    %c0_i32_1 = arith.constant 0 : i32
    return %c0_i32, %c0_i32_0 : i32, i32
  }
  func.func @transform_3(%arg0: i32) -> (i32, i32) {
    %c0_i32 = arith.constant 0 : i32
    %c0_i32_0 = arith.constant 0 : i32
    %c0_i32_1 = arith.constant 0 : i32
    return %c0_i32, %c0_i32_0 : i32, i32
  }
  func.func @transform_4(%arg0: i32) -> (i32, i32) {
    %c0_i32 = arith.constant 0 : i32
    %c0_i32_0 = arith.constant 0 : i32
    %c0_i32_1 = arith.constant 0 : i32
    return %c0_i32, %c0_i32_0 : i32, i32
  }
  func.func @transform_5(%arg0: i32) -> (i32, i32) {
    %c0_i32 = arith.constant 0 : i32
    %c0_i32_0 = arith.constant 0 : i32
    %c0_i32_1 = arith.constant 0 : i32
    return %c0_i32, %c0_i32_0 : i32, i32
  }
  func.func @transform_6(%arg0: i32) -> (i32, i32) {
    %c0_i32 = arith.constant 0 : i32
    %c0_i32_0 = arith.constant 0 : i32
    return %arg0, %c0_i32 : i32, i32
  }
}

</mosaic_0001>

<llo_original>
// kernel: tpu_custom_call.1
$region0: #{tpu_custom_call.1}
  #allocation0 [shape = 'u32[]', space=smem, size = 0x4, offset = 0x4, fixed_abs, tag = 'smem constant byte address 0x4 - core index']
  #allocation1 [shape = 'u32[144,128]{1,0:T(1,128)}', space=vmem, size = 0x12000, scoped, tag = 'internal scratch']
  %s0 = inlined_call_operand.hbm [shape: f32[8,128], index: 0, kind: input, shape index: {}]
  %s1 = inlined_call_operand.hbm [shape: u32[8,128], index: 1, kind: input, shape index: {}]
  %s2 = inlined_call_operand.hbm [shape: f32[128,128], index: 2, kind: input, shape index: {}]
  %s3 = inlined_call_operand.vmem [shape: f32[1,128], index: 3, kind: input, shape index: {}]
  %s4 = inlined_call_operand.hbm [shape: f32[128,128], index: 4, kind: input, shape index: {}]
  %s5 = inlined_call_operand.vmem [shape: f32[1,128], index: 5, kind: input, shape index: {}]
  %s6 = inlined_call_operand.hbm [shape: f32[8,128], index: 6, kind: output, shape index: {}]
  %s7 = sld [smem:[#allocation0]]
  $region50: #{tpu_custom_call.1} parent=0
    _
  %s9 = ssub.s32 1, %s7
  %s10 = scalar_select 0, %s9, %s7
  $region1: #{tpu_custom_call.1} parent=0
    #allocation2 [shape = 'u8[4096]{0}', space=vmem, size = 0x1000, scoped, tag = 'input window, operand 0, single buffered']
    #allocation3 [shape = 's32[1]{0}', space=sflag, size = 0x4, scoped, tag = 'scoped memory for tpu_custom_call.1']
    #allocation4 [shape = 's32[1]{0}', space=sflag, size = 0x4, scoped, tag = 'scoped memory for tpu_custom_call.1']
    #allocation5 [shape = 'u8[4096]{0}', space=vmem, size = 0x1000, scoped, tag = 'input window, operand 1, single buffered']
    #allocation6 [shape = 's32[1]{0}', space=sflag, size = 0x4, scoped, tag = 'scoped memory for tpu_custom_call.1']
    #allocation7 [shape = 'u8[65536]{0}', space=vmem, size = 0x10000, scoped, tag = 'input window, operand 2, single buffered']
    #allocation8 [shape = 'u8[65536]{0}', space=vmem, size = 0x10000, scoped, tag = 'input window, operand 4, single buffered']
    #allocation9 [shape = 's32[1]{0}', space=sflag, size = 0x4, scoped, tag = 'scoped memory for tpu_custom_call.1']
    #allocation10 [shape = 'u8[4096]{0}', space=vmem, size = 0x1000, scoped, tag = 'output window, operand 0, single buffered']
    %11 = vsyncpa [#allocation3], 0
    %12 = vsyncpa [#allocation6], 0
    %13 = vsyncpa [#allocation9], 0
    %14 = vsyncpa [#allocation4], 0
    // Predicated region
    $region2: #{tpu_custom_call.1} parent=1 // pred_check
      _
    $region3: #{tpu_custom_call.1} parent=1 // pred_check_branch
      %16 = sbr.rel (0) target = $region5
    $region4: #{tpu_custom_call.1} parent=1 // pred_region
      %s18 = ssub.s32 128, 128
      %19 = vsyncadd [#allocation3], %s18
      %s21 = sshll.u32 [#allocation2], 4
      %s22 = int_to_ptr.vmem [resolvable:$true] %s21
      %24 = dma.hbm_to_vmem [thread:$0]  %s0, 128, %s22, [#allocation3]
    $region5: #{tpu_custom_call.1} parent=1 // pred_fallthru
      _
    // Predicated region
    $region6: #{tpu_custom_call.1} parent=1 // pred_check
      _
    $region7: #{tpu_custom_call.1} parent=1 // pred_check_branch
      %26 = sbr.rel (0) target = $region9
    $region8: #{tpu_custom_call.1} parent=1 // pred_region
      %s28 = ssub.s32 128, 128
      %29 = vsyncadd [#allocation6], %s28
      %s31 = sshll.u32 [#allocation5], 4
      %s32 = int_to_ptr.vmem [resolvable:$true] %s31
      %34 = dma.hbm_to_vmem [thread:$0]  %s1, 128, %s32, [#allocation6]
    $region9: #{tpu_custom_call.1} parent=1 // pred_fallthru
      _
    // Predicated region
    $region10: #{tpu_custom_call.1} parent=1 // pred_check
      _
    $region11: #{tpu_custom_call.1} parent=1 // pred_check_branch
      %36 = sbr.rel (0) target = $region13
    $region12: #{tpu_custom_call.1} parent=1 // pred_region
      %s38 = ssub.s32 2048, 2048
      %39 = vsyncadd [#allocation6], %s38
      %s40 = sshll.u32 [#allocation7], 4
      %s41 = int_to_ptr.vmem [resolvable:$true] %s40
      %46 = dma.hbm_to_vmem [thread:$0]  %s2, 2048, %s41, [#allocation6], 128, 128, 8
    $region13: #{tpu_custom_call.1} parent=1 // pred_fallthru
      _
    // Predicated region
    $region14: #{tpu_custom_call.1} parent=1 // pred_check
      _
    $region15: #{tpu_custom_call.1} parent=1 // pred_check_branch
      %48 = sbr.rel (0) target = $region17
    $region16: #{tpu_custom_call.1} parent=1 // pred_region
      _
    $region17: #{tpu_custom_call.1} parent=1 // pred_fallthru
      _
    // Predicated region
    $region18: #{tpu_custom_call.1} parent=1 // pred_check
      _
    $region19: #{tpu_custom_call.1} parent=1 // pred_check_branch
      %50 = sbr.rel (0) target = $region21
    $region20: #{tpu_custom_call.1} parent=1 // pred_region
      %s52 = ssub.s32 2048, 2048
      %53 = vsyncadd [#allocation9], %s52
      %s54 = sshll.u32 [#allocation8], 4
      %s55 = int_to_ptr.vmem [resolvable:$true] %s54
      %60 = dma.hbm_to_vmem [thread:$0]  %s4, 2048, %s55, [#allocation9], 128, 128, 8
    $region21: #{tpu_custom_call.1} parent=1 // pred_fallthru
      _
    // Predicated region
    $region22: #{tpu_custom_call.1} parent=1 // pred_check
      _
    $region23: #{tpu_custom_call.1} parent=1 // pred_check_branch
      %62 = sbr.rel (0) target = $region25
    $region24: #{tpu_custom_call.1} parent=1 // pred_region
      _
    $region25: #{tpu_custom_call.1} parent=1 // pred_fallthru
      _
    // Predicated region
    $region26: #{tpu_custom_call.1} parent=1 // pred_check
      _
    $region27: #{tpu_custom_call.1} parent=1 // pred_check_branch
      %64 = sbr.rel (0) target = $region29
    $region28: #{tpu_custom_call.1} parent=1 // pred_region
      %65 = dma.done [#allocation3], 128
    $region29: #{tpu_custom_call.1} parent=1 // pred_fallthru
      _
    // Predicated region
    $region30: #{tpu_custom_call.1} parent=1 // pred_check
      _
    $region31: #{tpu_custom_call.1} parent=1 // pred_check_branch
      %67 = sbr.rel (0) target = $region33
    $region32: #{tpu_custom_call.1} parent=1 // pred_region
      %68 = dma.done [#allocation6], 128
    $region33: #{tpu_custom_call.1} parent=1 // pred_fallthru
      _
    // Predicated region
    $region34: #{tpu_custom_call.1} parent=1 // pred_check
      _
    $region35: #{tpu_custom_call.1} parent=1 // pred_check_branch
      %70 = sbr.rel (0) target = $region37
    $region36: #{tpu_custom_call.1} parent=1 // pred_region
      %71 = dma.done [#allocation6], 2048
    $region37: #{tpu_custom_call.1} parent=1 // pred_fallthru
      _
    // Predicated region
    $region38: #{tpu_custom_call.1} parent=1 // pred_check
      _
    $region39: #{tpu_custom_call.1} parent=1 // pred_check_branch
      %73 = sbr.rel (0) target = $region41
    $region40: #{tpu_custom_call.1} parent=1 // pred_region
      %74 = dma.done [#allocation9], 2048
    $region41: #{tpu_custom_call.1} parent=1 // pred_fallthru
      _
    %v75 = vld [vmem:[#allocation2] sm:$0xff]
    %v76 = vld [vmem:[#allocation5] sm:$0xff]
    %vm77 = vcmp.ge.u32.totalorder %v76, 858993459
    %v78 = vsel %vm77, 1.25, 0.0
    %v79 = vmul.f32 %v75, %v78
    %v80 = vld [vmem:[#allocation7] sm:$0xff]
    %v81 = vld [vmem:[#allocation7 + $0x8] sm:$0xff]
    %v82 = vld [vmem:[#allocation7 + $0x10] sm:$0xff]
    %v83 = vld [vmem:[#allocation7 + $0x18] sm:$0xff]
    %v84 = vld [vmem:[#allocation7 + $0x20] sm:$0xff]
    %v85 = vld [vmem:[#allocation7 + $0x28] sm:$0xff]
    %v86 = vld [vmem:[#allocation7 + $0x30] sm:$0xff]
    %v87 = vld [vmem:[#allocation7 + $0x38] sm:$0xff]
    %v88 = vld [vmem:[#allocation7 + $0x40] sm:$0xff]
    %v89 = vld [vmem:[#allocation7 + $0x48] sm:$0xff]
    %v90 = vld [vmem:[#allocation7 + $0x50] sm:$0xff]
    %v91 = vld [vmem:[#allocation7 + $0x58] sm:$0xff]
    %v92 = vld [vmem:[#allocation7 + $0x60] sm:$0xff]
    %v93 = vld [vmem:[#allocation7 + $0x68] sm:$0xff]
    %v94 = vld [vmem:[#allocation7 + $0x70] sm:$0xff]
    %v95 = vld [vmem:[#allocation7 + $0x78] sm:$0xff]
    %v96 = vld [vmem:[%s3] sm:$0x1]
    %v98 = vlaneseq
    %v99 = vshrl.u32 %v98, 7
    %v100 = vsub.s32 0, %v99
    %v101 = vrot.slane %v96, %v100
    %103 = vmatprep.subr.mxu0 0.0
    %104 = vmatpush1.msra.mxu0 %v95
    %105 = vmatprep.subr.mxu0 0.0
    %106 = vmatpush1.msra.mxu0 %v94
    %107 = vmatprep.subr.mxu0 0.0
    %108 = vmatpush1.msra.mxu0 %v93
    %109 = vmatprep.subr.mxu0 0.0
    %110 = vmatpush1.msra.mxu0 %v92
    %111 = vmatprep.subr.mxu0 0.0
    %112 = vmatpush1.msra.mxu0 %v91
    %113 = vmatprep.subr.mxu0 0.0
    %114 = vmatpush1.msra.mxu0 %v90
    %115 = vmatprep.subr.mxu0 0.0
    %116 = vmatpush1.msra.mxu0 %v89
    %117 = vmatprep.subr.mxu0 0.0
    %118 = vmatpush1.msra.mxu0 %v88
    %119 = vmatprep.subr.mxu0 0.0
    %120 = vmatpush1.msra.mxu0 %v87
    %121 = vmatprep.subr.mxu0 0.0
    %122 = vmatpush1.msra.mxu0 %v86
    %123 = vmatprep.subr.mxu0 0.0
    %124 = vmatpush1.msra.mxu0 %v85
    %125 = vmatprep.subr.mxu0 0.0
    %126 = vmatpush1.msra.mxu0 %v84
    %127 = vmatprep.subr.mxu0 0.0
    %128 = vmatpush1.msra.mxu0 %v83
    %129 = vmatprep.subr.mxu0 0.0
    %130 = vmatpush1.msra.mxu0 %v82
    %131 = vmatprep.subr.mxu0 0.0
    %132 = vmatpush1.msra.mxu0 %v81
    %133 = vmatprep.subr.mxu0 0.0
    %134 = vmatpush1.msra.mxu0 %v80
    %135 = vmatprep.subr.mxu0 0.0
    %136 = vmatpush2.msra.mxu0 0.0
    %137 = vmatprep.subr.mxu0 0.0
    %138 = vmatpush2.msra.mxu0 0.0
    %139 = vmatprep.subr.mxu0 0.0
    %140 = vmatpush2.msra.mxu0 0.0
    %141 = vmatprep.subr.mxu0 0.0
    %142 = vmatpush2.msra.mxu0 0.0
    %143 = vmatprep.subr.mxu0 0.0
    %144 = vmatpush2.msra.mxu0 0.0
    %145 = vmatprep.subr.mxu0 0.0
    %146 = vmatpush2.msra.mxu0 0.0
    %147 = vmatprep.subr.mxu0 0.0
    %148 = vmatpush2.msra.mxu0 0.0
    %149 = vmatprep.subr.mxu0 0.0
    %150 = vmatpush2.msra.mxu0 0.0
    %151 = vmatprep.subr.mxu0 0.0
    %152 = vmatpush2.msra.mxu0 0.0
    %153 = vmatprep.subr.mxu0 0.0
    %154 = vmatpush2.msra.mxu0 0.0
    %155 = vmatprep.subr.mxu0 0.0
    %156 = vmatpush2.msra.mxu0 0.0
    %157 = vmatprep.subr.mxu0 0.0
    %158 = vmatpush2.msra.mxu0 0.0
    %159 = vmatprep.subr.mxu0 0.0
    %160 = vmatpush2.msra.mxu0 0.0
    %161 = vmatprep.subr.mxu0 0.0
    %162 = vmatpush2.msra.mxu0 0.0
    %163 = vmatprep.subr.mxu0 0.0
    %164 = vmatpush2.msra.mxu0 0.0
    %165 = vmatprep.subr.mxu0 0.0
    %166 = vmatpush2.msra.mxu0 0.0
    %167 = vmatprep.mubr.f32.mxu0 0.0
    %168 = vmatmul.mubr.f32.gmra.mxu0 %v79
    %v169 = vpop.f32.mrf.mxu0
    %v170 = vadd.f32 %v101, %v169
    %v171 = vpop.f32.mrf.mxu0
    %172 = vdwg.mxu0
    %v173 = vxor.u32 %v170, 2147483648
    %v174 = vmul.f32 %v173, 1.442695
    %v175 = vpow.pop %v174
    %v176 = vadd.f32 %v175, 1.0
    %v177 = vrcp.pop %v176
    %v178 = vmul.f32 1.0, %v177
    %v179 = vld [vmem:[#allocation8] sm:$0xff]
    %v180 = vld [vmem:[#allocation8 + $0x8] sm:$0xff]
    %v181 = vld [vmem:[#allocation8 + $0x10] sm:$0xff]
    %v182 = vld [vmem:[#allocation8 + $0x18] sm:$0xff]
    %v183 = vld [vmem:[#allocation8 + $0x20] sm:$0xff]
    %v184 = vld [vmem:[#allocation8 + $0x28] sm:$0xff]
    %v185 = vld [vmem:[#allocation8 + $0x30] sm:$0xff]
    %v186 = vld [vmem:[#allocation8 + $0x38] sm:$0xff]
    %v187 = vld [vmem:[#allocation8 + $0x40] sm:$0xff]
    %v188 = vld [vmem:[#allocation8 + $0x48] sm:$0xff]
    %v189 = vld [vmem:[#allocation8 + $0x50] sm:$0xff]
    %v190 = vld [vmem:[#allocation8 + $0x58] sm:$0xff]
    %v191 = vld [vmem:[#allocation8 + $0x60] sm:$0xff]
    %v192 = vld [vmem:[#allocation8 + $0x68] sm:$0xff]
    %v193 = vld [vmem:[#allocation8 + $0x70] sm:$0xff]
    %v194 = vld [vmem:[#allocation8 + $0x78] sm:$0xff]
    %v195 = vld [vmem:[%s5] sm:$0x1]
    %v197 = vlaneseq
    %v198 = vshrl.u32 %v197, 7
    %v199 = vsub.s32 0, %v198
    %v200 = vrot.slane %v195, %v199
    %202 = vmatprep.subr.mxu0 0.0
    %203 = vmatpush1.msra.mxu0 %v194
    %204 = vmatprep.subr.mxu0 0.0
    %205 = vmatpush1.msra.mxu0 %v193
    %206 = vmatprep.subr.mxu0 0.0
    %207 = vmatpush1.msra.mxu0 %v192
    %208 = vmatprep.subr.mxu0 0.0
    %209 = vmatpush1.msra.mxu0 %v191
    %210 = vmatprep.subr.mxu0 0.0
    %211 = vmatpush1.msra.mxu0 %v190
    %212 = vmatprep.subr.mxu0 0.0
    %213 = vmatpush1.msra.mxu0 %v189
    %214 = vmatprep.subr.mxu0 0.0
    %215 = vmatpush1.msra.mxu0 %v188
    %216 = vmatprep.subr.mxu0 0.0
    %217 = vmatpush1.msra.mxu0 %v187
    %218 = vmatprep.subr.mxu0 0.0
    %219 = vmatpush1.msra.mxu0 %v186
    %220 = vmatprep.subr.mxu0 0.0
    %221 = vmatpush1.msra.mxu0 %v185
    %222 = vmatprep.subr.mxu0 0.0
    %223 = vmatpush1.msra.mxu0 %v184
    %224 = vmatprep.subr.mxu0 0.0
    %225 = vmatpush1.msra.mxu0 %v183
    %226 = vmatprep.subr.mxu0 0.0
    %227 = vmatpush1.msra.mxu0 %v182
    %228 = vmatprep.subr.mxu0 0.0
    %229 = vmatpush1.msra.mxu0 %v181
    %230 = vmatprep.subr.mxu0 0.0
    %231 = vmatpush1.msra.mxu0 %v180
    %232 = vmatprep.subr.mxu0 0.0
    %233 = vmatpush1.msra.mxu0 %v179
    %234 = vmatprep.subr.mxu0 0.0
    %235 = vmatpush2.msra.mxu0 0.0
    %236 = vmatprep.subr.mxu0 0.0
    %237 = vmatpush2.msra.mxu0 0.0
    %238 = vmatprep.subr.mxu0 0.0
    %239 = vmatpush2.msra.mxu0 0.0
    %240 = vmatprep.subr.mxu0 0.0
    %241 = vmatpush2.msra.mxu0 0.0
    %242 = vmatprep.subr.mxu0 0.0
    %243 = vmatpush2.msra.mxu0 0.0
    %244 = vmatprep.subr.mxu0 0.0
    %245 = vmatpush2.msra.mxu0 0.0
    %246 = vmatprep.subr.mxu0 0.0
    %247 = vmatpush2.msra.mxu0 0.0
    %248 = vmatprep.subr.mxu0 0.0
    %249 = vmatpush2.msra.mxu0 0.0
    %250 = vmatprep.subr.mxu0 0.0
    %251 = vmatpush2.msra.mxu0 0.0
    %252 = vmatprep.subr.mxu0 0.0
    %253 = vmatpush2.msra.mxu0 0.0
    %254 = vmatprep.subr.mxu0 0.0
    %255 = vmatpush2.msra.mxu0 0.0
    %256 = vmatprep.subr.mxu0 0.0
    %257 = vmatpush2.msra.mxu0 0.0
    %258 = vmatprep.subr.mxu0 0.0
    %259 = vmatpush2.msra.mxu0 0.0
    %260 = vmatprep.subr.mxu0 0.0
    %261 = vmatpush2.msra.mxu0 0.0
    %262 = vmatprep.subr.mxu0 0.0
    %263 = vmatpush2.msra.mxu0 0.0
    %264 = vmatprep.subr.mxu0 0.0
    %265 = vmatpush2.msra.mxu0 0.0
    %266 = vmatprep.mubr.f32.mxu0 0.0
    %267 = vmatmul.mubr.f32.gmra.mxu0 %v178
    %v268 = vpop.f32.mrf.mxu0
    %v269 = vadd.f32 %v200, %v268
    %v270 = vpop.f32.mrf.mxu0
    %271 = vdwg.mxu0
    %272 = vst [vmem:[#allocation10] sm:$0xff] %v269
    // Predicated region
    $region42: #{tpu_custom_call.1} parent=1 // pred_check
      _
    $region43: #{tpu_custom_call.1} parent=1 // pred_check_branch
      %274 = sbr.rel (0) target = $region45
    $region44: #{tpu_custom_call.1} parent=1 // pred_region
      %s276 = ssub.s32 128, 128
      %277 = vsyncadd [#allocation4], %s276
      %s279 = sshll.u32 [#allocation10], 4
      %s280 = int_to_ptr.vmem [resolvable:$true] %s279
      %282 = dma.vmem_to_hbm [thread:$0]  %s280, 128, %s6, [#allocation4]
    $region45: #{tpu_custom_call.1} parent=1 // pred_fallthru
      _
    // Predicated region
    $region46: #{tpu_custom_call.1} parent=1 // pred_check
      _
    $region47: #{tpu_custom_call.1} parent=1 // pred_check_branch
      %284 = sbr.rel (0) target = $region49
    $region48: #{tpu_custom_call.1} parent=1 // pred_region
      %285 = dma.done [#allocation4], 128
    $region49: #{tpu_custom_call.1} parent=1 // pred_fallthru
      _
    %286 = vsyncpa [#allocation3], 1
    %287 = vsyncpa [#allocation6], 1
    %288 = vsyncpa [#allocation9], 1
    %289 = vsyncpa [#allocation4], 1

</llo_original>
